<compile_context>
chip_gen: v7x
topology: tpu7x:2x2x1
jax: 0.10.0
libtpu: 0.0.40
codegen_flags: <defaults>
</compile_context>

<pallas_src>
import jax
import jax.numpy as jnp
from jax.experimental import pallas as pl
from jax.experimental.pallas import tpu as pltpu


def _linear_add_relu_kernel(x_ref, wt_ref, bx2_ref, o_ref):
    # x_ref: [N, K]  wt_ref: [K, M]  bx2_ref: [1, M]  o_ref: [N, M]
    y = jnp.dot(x_ref[...], wt_ref[...], preferred_element_type=jnp.float32)
    y = y + bx2_ref[...]  # broadcast [1, M] over rows
    o_ref[...] = jnp.maximum(y, 0.0).astype(o_ref.dtype)


@jax.jit
def linear_add_relu(x1, w_t, bias, x2):
    """relu(x1 @ w_t + bias + x2).

    x1:   [N, K]
    w_t:  [K, M]   (pre-transposed Linear weight)
    bias: [M]
    x2:   [M]
    """
    n, k = x1.shape
    m = w_t.shape[1]

    # Fold bias + x2 into a single [1, M] operand (one fewer kernel input/DMA).
    bx2 = (bias + x2).reshape(1, m).astype(jnp.float32)

    cost = pl.CostEstimate(
        flops=2 * n * k * m,
        transcendentals=0,
        bytes_accessed=4 * (n * k + k * m + m + n * m),
    )

    return pl.pallas_call(
        _linear_add_relu_kernel,
        out_shape=jax.ShapeDtypeStruct((n, m), jnp.float32),
        in_specs=[
            pl.BlockSpec(memory_space=pltpu.MemorySpace.VMEM),
            pl.BlockSpec(memory_space=pltpu.MemorySpace.VMEM),
            pl.BlockSpec(memory_space=pltpu.MemorySpace.VMEM),
        ],
        out_specs=pl.BlockSpec(memory_space=pltpu.MemorySpace.VMEM),
        cost_estimate=cost,
    )(x1, w_t, bx2)


if __name__ == "__main__":
    key = jax.random.PRNGKey(0)
    k_x1, k_x2, k_w, k_b = jax.random.split(key, 4)

    N, K, M = 9, 128, 48

    # Inputs (x2 uses the broadcast-compatible shape, see NOTE above).
    x1 = jax.random.normal(k_x1, (N, K), dtype=jnp.float32)
    x2 = jax.random.normal(k_x2, (M,), dtype=jnp.float32)

    # Deterministic Linear(128, 48) params (PyTorch-style uniform init bound).
    bound = 1.0 / jnp.sqrt(jnp.float32(K))
    weight = jax.random.uniform(k_w, (M, K), minval=-bound, maxval=bound,
                                dtype=jnp.float32)
    bias = jax.random.uniform(k_b, (M,), minval=-bound, maxval=bound,
                              dtype=jnp.float32)

    # Pre-transpose the weight once, outside the hot path.
    w_t = jnp.asarray(weight.T)  # [K, M]

    out = linear_add_relu(x1, w_t, bias, x2)
    out = jax.block_until_ready(out)

    # Cross-check against plain-JAX reference.
    ref = jnp.maximum(x1 @ weight.T + bias + x2, 0.0)
    assert out.shape == (N, M)
    assert jnp.allclose(out, ref, atol=1e-5, rtol=1e-5)

    print("KERNEL_OK")
</pallas_src>

<mosaic_0001>
module attributes {stable_mosaic.version = 11 : i64} {
  func.func @_linear_add_relu_kernel(%arg0: memref<9x128xf32, #tpu.memory_space<vmem>>, %arg1: memref<128x48xf32, #tpu.memory_space<vmem>>, %arg2: memref<1x48xf32, #tpu.memory_space<vmem>>, %arg3: memref<9x48xf32, #tpu.memory_space<vmem>>) attributes {dimension_semantics = [], scalar_prefetch = 0 : i64, scratch_operands = 0 : i64, tpu.core_type = #tpu.core_type<tc>} {
    %c0 = arith.constant 0 : index
    %c0_0 = arith.constant 0 : index
    %0 = vector.load %arg0[%c0, %c0_0] : memref<9x128xf32, #tpu.memory_space<vmem>>, vector<9x128xf32>
    %c0_1 = arith.constant 0 : index
    %c0_2 = arith.constant 0 : index
    %1 = vector.load %arg1[%c0_1, %c0_2] : memref<128x48xf32, #tpu.memory_space<vmem>>, vector<128x48xf32>
    %cst = arith.constant dense<0.000000e+00> : vector<9x48xf32>
    %2 = tpu.matmul %0, %1, %cst {dimension_numbers = #tpu.dot_dimension_numbers<[1], [0], [0], [1], [0, 0, 1, 1], [], []>} : vector<9x128xf32>, vector<128x48xf32>, vector<9x48xf32> -> vector<9x48xf32>
    %c0_3 = arith.constant 0 : index
    %c0_4 = arith.constant 0 : index
    %3 = vector.load %arg2[%c0_3, %c0_4] : memref<1x48xf32, #tpu.memory_space<vmem>>, vector<1x48xf32>
    %4 = vector.broadcast %3 : vector<1x48xf32> to vector<9x48xf32>
    %5 = arith.addf %2, %4 : vector<9x48xf32>
    %cst_5 = arith.constant 0.000000e+00 : f32
    %6 = vector.broadcast %cst_5 : f32 to vector<9x48xf32>
    %7 = arith.maximumf %5, %6 : vector<9x48xf32>
    %c0_6 = arith.constant 0 : index
    %c0_7 = arith.constant 0 : index
    %8 = vector.load %arg3[%c0_6, %c0_7] : memref<9x48xf32, #tpu.memory_space<vmem>>, vector<9x48xf32>
    tpu.vector_store %arg3[%c0_6, %c0_7], %7 {strides = array<i32>} : memref<9x48xf32, #tpu.memory_space<vmem>>, vector<9x48xf32>,
    return
  }
}

</mosaic_0001>

<llo_original>
// kernel: linear_add_relu.1
$region0: #{linear_add_relu.1}
  #allocation0 [shape = 'u32[]', space=smem, size = 0x4, offset = 0x4, fixed_abs, tag = 'smem constant byte address 0x4 - core index']
  #allocation1 [shape = 'u32[144,128]{1,0:T(1,128)}', space=vmem, size = 0x12000, scoped, tag = 'internal scratch']
  %s0 = inlined_call_operand.vmem [shape: f32[9,128], index: 0, kind: input, shape index: {}]
  %s1 = inlined_call_operand.vmem [shape: f32[128,48], index: 1, kind: input, shape index: {}]
  %s2 = inlined_call_operand.vmem [shape: f32[1,48], index: 2, kind: input, shape index: {}]
  %s3 = inlined_call_operand.hbm [shape: f32[9,48], index: 3, kind: output, shape index: {}]
  %s4 = sld [smem:[#allocation0]]
  $region22: #{linear_add_relu.1} parent=0
    _
  %s6 = ssub.s32 1, %s4
  %s7 = scalar_select 0, %s6, %s4
  $region1: #{linear_add_relu.1} parent=0
    #allocation2 [shape = 'u8[8192]{0}', space=vmem, size = 0x2000, scoped, tag = 'output window, operand 0, single buffered']
    #allocation3 [shape = 's32[1]{0}', space=sflag, size = 0x4, scoped, tag = 'scoped memory for linear_add_relu.1']
    %8 = vsyncpa [#allocation3], 0
    // Predicated region
    $region2: #{linear_add_relu.1} parent=1 // pred_check
      _
    $region3: #{linear_add_relu.1} parent=1 // pred_check_branch
      %10 = sbr.rel (0) target = $region5
    $region4: #{linear_add_relu.1} parent=1 // pred_region
      _
    $region5: #{linear_add_relu.1} parent=1 // pred_fallthru
      _
    // Predicated region
    $region6: #{linear_add_relu.1} parent=1 // pred_check
      _
    $region7: #{linear_add_relu.1} parent=1 // pred_check_branch
      %12 = sbr.rel (0) target = $region9
    $region8: #{linear_add_relu.1} parent=1 // pred_region
      _
    $region9: #{linear_add_relu.1} parent=1 // pred_fallthru
      _
    // Predicated region
    $region10: #{linear_add_relu.1} parent=1 // pred_check
      _
    $region11: #{linear_add_relu.1} parent=1 // pred_check_branch
      %14 = sbr.rel (0) target = $region13
    $region12: #{linear_add_relu.1} parent=1 // pred_region
      _
    $region13: #{linear_add_relu.1} parent=1 // pred_fallthru
      _
    %v15 = vld [vmem:[%s0] sm:$0xff]
    %v16 = vld [vmem:[%s0 + $0x8] sm:$0x1]
    %v17 = vld [vmem:[%s1] sm:$0xff]
    %v18 = vld [vmem:[%s1 + $0x8] sm:$0xff]
    %v19 = vld [vmem:[%s1 + $0x10] sm:$0xff]
    %v20 = vld [vmem:[%s1 + $0x18] sm:$0xff]
    %v21 = vld [vmem:[%s1 + $0x20] sm:$0xff]
    %v22 = vld [vmem:[%s1 + $0x28] sm:$0xff]
    %v23 = vld [vmem:[%s1 + $0x30] sm:$0xff]
    %v24 = vld [vmem:[%s1 + $0x38] sm:$0xff]
    %v25 = vld [vmem:[%s1 + $0x40] sm:$0xff]
    %v26 = vld [vmem:[%s1 + $0x48] sm:$0xff]
    %v27 = vld [vmem:[%s1 + $0x50] sm:$0xff]
    %v28 = vld [vmem:[%s1 + $0x58] sm:$0xff]
    %v29 = vld [vmem:[%s1 + $0x60] sm:$0xff]
    %v30 = vld [vmem:[%s1 + $0x68] sm:$0xff]
    %v31 = vld [vmem:[%s1 + $0x70] sm:$0xff]
    %v32 = vld [vmem:[%s1 + $0x78] sm:$0xff]
    %v33 = vld [vmem:[%s2] sm:$0x1]
    %v35 = vlaneseq
    %v36 = vshrl.u32 %v35, 7
    %v37 = vsub.s32 0, %v36
    %v38 = vrot.slane %v33, %v37
    %40 = vmatprep.subr.mxu0 0.0
    %41 = vmatpush1.msra.mxu0 %v17
    %42 = vmatprep.subr.mxu0 0.0
    %43 = vmatpush1.msra.mxu0 %v18
    %44 = vmatprep.subr.mxu0 0.0
    %45 = vmatpush1.msra.mxu0 %v19
    %46 = vmatprep.subr.mxu0 0.0
    %47 = vmatpush1.msra.mxu0 %v20
    %48 = vmatprep.subr.mxu0 0.0
    %49 = vmatpush1.msra.mxu0 %v21
    %50 = vmatprep.subr.mxu0 0.0
    %51 = vmatpush1.msra.mxu0 %v22
    %52 = vmatprep.subr.mxu0 0.0
    %53 = vmatpush1.msra.mxu0 %v23
    %54 = vmatprep.subr.mxu0 0.0
    %55 = vmatpush1.msra.mxu0 %v24
    %56 = vmatprep.subr.mxu0 0.0
    %57 = vmatpush1.msra.mxu0 %v25
    %58 = vmatprep.subr.mxu0 0.0
    %59 = vmatpush1.msra.mxu0 %v26
    %60 = vmatprep.subr.mxu0 0.0
    %61 = vmatpush1.msra.mxu0 %v27
    %62 = vmatprep.subr.mxu0 0.0
    %63 = vmatpush1.msra.mxu0 %v28
    %64 = vmatprep.subr.mxu0 0.0
    %65 = vmatpush1.msra.mxu0 %v29
    %66 = vmatprep.subr.mxu0 0.0
    %67 = vmatpush1.msra.mxu0 %v30
    %68 = vmatprep.subr.mxu0 0.0
    %69 = vmatpush1.msra.mxu0 %v31
    %70 = vmatprep.subr.mxu0 0.0
    %71 = vmatpush1.msra.mxu0 %v32
    %72 = vmatprep.subr.mxu0 0.0
    %73 = vmatpush1.msra.mxu0 0.0
    %74 = vmatprep.subr.mxu0 0.0
    %75 = vmatpush1.msra.mxu0 0.0
    %76 = vmatprep.subr.mxu0 0.0
    %77 = vmatpush1.msra.mxu0 0.0
    %78 = vmatprep.subr.mxu0 0.0
    %79 = vmatpush1.msra.mxu0 0.0
    %80 = vmatprep.subr.mxu0 0.0
    %81 = vmatpush1.msra.mxu0 0.0
    %82 = vmatprep.subr.mxu0 0.0
    %83 = vmatpush1.msra.mxu0 0.0
    %84 = vmatprep.subr.mxu0 0.0
    %85 = vmatpush1.msra.mxu0 0.0
    %86 = vmatprep.subr.mxu0 0.0
    %87 = vmatpush1.msra.mxu0 0.0
    %88 = vmatprep.subr.mxu0 0.0
    %89 = vmatpush1.msra.mxu0 0.0
    %90 = vmatprep.subr.mxu0 0.0
    %91 = vmatpush1.msra.mxu0 0.0
    %92 = vmatprep.subr.mxu0 0.0
    %93 = vmatpush1.msra.mxu0 0.0
    %94 = vmatprep.subr.mxu0 0.0
    %95 = vmatpush1.msra.mxu0 0.0
    %96 = vmatprep.subr.mxu0 0.0
    %97 = vmatpush1.msra.mxu0 0.0
    %98 = vmatprep.subr.mxu0 0.0
    %99 = vmatpush1.msra.mxu0 0.0
    %100 = vmatprep.subr.mxu0 0.0
    %101 = vmatpush1.msra.mxu0 0.0
    %102 = vmatprep.subr.mxu0 0.0
    %103 = vmatpush1.msra.mxu0 0.0
    %104 = vmatprep.mubr.f32.mxu0 0.0
    %105 = vmatmul.mubr.f32.gmra.mrb[0].mxu0 %v15
    %v106 = vpop.f32.mrb[0].mxu0
    %v107 = vadd.f32 %v38, %v106
    %v108 = vpop.f32.mrb[0].mxu0
    %109 = vmatprep.mubr.f32.mxu0 0.0
    %110 = vmatmul.mubr.f32.gmra.mrb[0].mxu0 %v16
    %v111 = vpop.f32.mrb[0].mxu0
    %v112 = vadd.f32 %v38, %v111
    %v113 = vpop.f32.mrb[0].mxu0
    %114 = vdwg.mxu0
    %v115 = vmax.f32 %v107, 0.0
    %v116 = vmax.f32 %v112, 0.0
    %vm117 = vcmask 392192
    %118 = vst.msk [vmem:[#allocation2] sm:$0xff] %vm117, %v115
    %vm119 = vcmask 385024
    %120 = vst.msk [vmem:[#allocation2 + $0x8] sm:$0x1] %vm119, %v116
    // Predicated region
    $region14: #{linear_add_relu.1} parent=1 // pred_check
      _
    $region15: #{linear_add_relu.1} parent=1 // pred_check_branch
      %122 = sbr.rel (0) target = $region17
    $region16: #{linear_add_relu.1} parent=1 // pred_region
      %s124 = ssub.s32 256, 256
      %125 = vsyncadd [#allocation3], %s124
      %s126 = sshll.u32 [#allocation2], 4
      %s127 = int_to_ptr.vmem [resolvable:$true] %s126
      %132 = dma.vmem_to_hbm [thread:$0]  %s127, 256, %s3, [#allocation3], 128, 128, 8
    $region17: #{linear_add_relu.1} parent=1 // pred_fallthru
      _
    // Predicated region
    $region18: #{linear_add_relu.1} parent=1 // pred_check
      _
    $region19: #{linear_add_relu.1} parent=1 // pred_check_branch
      %134 = sbr.rel (0) target = $region21
    $region20: #{linear_add_relu.1} parent=1 // pred_region
      %135 = dma.done [#allocation3], 256
    $region21: #{linear_add_relu.1} parent=1 // pred_fallthru
      _
    %136 = vsyncpa [#allocation3], 1

</llo_original>
